<compile_context>
chip_gen: v5e
topology: v5e:2x2
jax: 0.10.0
libtpu: 0.0.40
codegen_flags: <defaults>
</compile_context>

<pallas_src>
import math

import jax
import jax.numpy as jnp
from jax.experimental import pallas as pl
from jax.experimental.pallas import tpu as pltpu


def _round_up(x, m):
    return (x + m - 1) // m * m


def _cdiv(a, b):
    return (a + b - 1) // b


def _vmem_budget_bytes():
    """~half of physical VMEM: ~64 MiB on v5e/v6e (128 MiB), ~32 MiB on v7x (64 MiB)."""
    phys = None
    try:
        info = pltpu.get_tpu_info()
        phys = getattr(info, "vmem_capacity_bytes", None)
    except Exception:
        phys = None
    if not phys:
        phys = 64 << 20          # conservative fallback (assume small-VMEM chip)
    return int(min(max(phys // 2, 16 << 20), 64 << 20))


_MAX_TILE_S = 32768              # lane columns; amortizes per-grid-step overhead


def _choose_tiles(N, S, Cin, Chid, Cout, x_item, w_item, budget,
                  tile_s=None, tile_k=None):
    # --- image packing: fill the 8-row f32 sublane height when Cin is small.
    nb = 1
    if Cin < 8:
        target = max(1, 8 // max(Cin, 1))
        for d in range(min(target, N), 0, -1):
            if N % d == 0:
                nb = d
                break

    # --- hidden-channel tile: keep full Chid when the (double-buffered)
    # weights fit in ~half the budget, otherwise tile in multiples of 128.
    if tile_k is None:
        w_bytes_full = 2 * Chid * (Cin + Cout) * w_item
        if Chid <= 128 or w_bytes_full <= budget // 2:
            tile_k = Chid
        else:
            cap = ((budget // 2) // (2 * (Cin + Cout) * w_item)) // 128 * 128
            cap = max(128, min(cap, Chid))
            n_k = _cdiv(Chid, cap)
            tile_k = min(_round_up(_cdiv(Chid, n_k), 128), cap)
    else:
        tile_k = min(int(tile_k), Chid)
        if tile_k < Chid:
            tile_k = max(128, _round_up(tile_k, 128))
            if tile_k >= Chid:
                tile_k = Chid

    # --- spatial tile: largest 128-multiple that fits the remaining budget.
    # Per-column bytes: x (2x buffered) + out (2x) + acc scratch + 2nd-dot temp
    # + f32 hidden (with headroom for a cast copy).
    per_col = (2 * nb * Cin * x_item + 2 * nb * Cout * x_item
               + 2 * nb * Cout * 4 + 2 * nb * tile_k * 4)
    fixed = 2 * tile_k * (Cin + Cout) * w_item + 2 * (tile_k + Cout) * 4
    if tile_s is None:
        avail = max(budget - fixed, 128 * per_col)
        tile_s = (avail // max(per_col, 1)) // 128 * 128
        tile_s = max(128, min(tile_s, _MAX_TILE_S))
    else:
        tile_s = max(128, _round_up(int(tile_s), 128))
    tile_s = min(tile_s, _round_up(S, 128))

    # --- v7x megacore: keep at least 2 "parallel" grid steps when possible.
    if (N // nb) * _cdiv(S, tile_s) < 2:
        if S > 128:
            tile_s = max(128, _round_up(_cdiv(S, 2), 128))
        elif nb > 1:
            nb = next(d for d in range(nb // 2, 0, -1) if N % d == 0)
    return nb, tile_k, tile_s


def _mlp_kernel(x_ref, w1_ref, b1_ref, w2_ref, b2_ref, o_ref, acc_ref):
    # x_ref:   (nb, Cin, TS)   channel-major spatial tile of nb images
    # w1_ref:  (TK, Cin)       b1_ref: (TK, 1)
    # w2_ref:  (Cout, TK)      b2_ref: (Cout, 1)
    # o_ref:   (nb, Cout, TS)
    # acc_ref: (nb, Cout, TS)  f32 accumulator over the hidden-channel grid axis
    k = pl.program_id(2)

    @pl.when(k == 0)
    def _():
        acc_ref[...] = jnp.zeros_like(acc_ref)

    w1 = w1_ref[...]
    b1 = b1_ref[...]
    w2 = w2_ref[...]
    nb = x_ref.shape[0]
    for i in range(nb):                       # nb is a small static int
        # Conv1x1 #1 (+bias, ReLU) in f32 for this hidden-channel slice.
        h = jnp.dot(w1, x_ref[i], preferred_element_type=jnp.float32)
        h = jnp.maximum(h + b1, 0.0)
        # Conv1x1 #2: partial sum over this hidden-channel slice.
        acc_ref[i] = acc_ref[i] + jnp.dot(
            w2, h.astype(w2.dtype), preferred_element_type=jnp.float32)

    @pl.when(k == pl.num_programs(2) - 1)
    def _():
        o_ref[...] = (acc_ref[...] + b2_ref[...][None]).astype(o_ref.dtype)


def mlp_pallas(x_nchw, w1, b1, w2, b2, *, tile_s=None, tile_k=None):
    """x_nchw: (N, Cin, H, W); w1: (Chid, Cin); b1: (Chid, 1);
    w2: (Cout, Chid); b2: (Cout, 1).  Returns (N, Cout, H, W)."""
    N, Cin, H, W = x_nchw.shape
    Chid = w1.shape[0]
    Cout = w2.shape[0]
    S = H * W

    x_item = jnp.dtype(x_nchw.dtype).itemsize
    w_item = jnp.dtype(w1.dtype).itemsize
    budget = _vmem_budget_bytes()
    nb, tile_k, tile_s = _choose_tiles(N, S, Cin, Chid, Cout, x_item, w_item,
                                       budget, tile_s=tile_s, tile_k=tile_k)

    # NCHW is already channel-major: flattening spatial is free.
    x_rows = x_nchw.reshape(N, Cin, S)
    S_pad = _round_up(S, tile_s)
    if S_pad != S:
        # 1x1 conv is per-column, so zero columns can't contaminate real ones.
        x_rows = jnp.pad(x_rows, ((0, 0), (0, 0), (0, S_pad - S)))

    # Pad the hidden-channel axis to a multiple of tile_k (padded hidden rows
    # are ReLU(0+0)=0 and hit zero w2 columns -> no contribution).
    Chid_pad = _round_up(Chid, tile_k)
    if Chid_pad != Chid:
        w1 = jnp.pad(w1, ((0, Chid_pad - Chid), (0, 0)))
        b1 = jnp.pad(b1, ((0, Chid_pad - Chid), (0, 0)))
        w2 = jnp.pad(w2, ((0, 0), (0, Chid_pad - Chid)))

    grid = (N // nb, S_pad // tile_s, Chid_pad // tile_k)

    flops = 2 * N * S_pad * Chid_pad * (Cin + Cout)
    bytes_accessed = (N * S_pad * (Cin + Cout) * x_item
                      + Chid_pad * (Cin + Cout) * w_item
                      + (Chid_pad + Cout) * 4)

    out_rows = pl.pallas_call(
        _mlp_kernel,
        out_shape=jax.ShapeDtypeStruct((N, Cout, S_pad), x_nchw.dtype),
        grid=grid,
        in_specs=[
            pl.BlockSpec((nb, Cin, tile_s), lambda g, s, k: (g, 0, s)),
            pl.BlockSpec((tile_k, Cin), lambda g, s, k: (k, 0)),
            pl.BlockSpec((tile_k, 1), lambda g, s, k: (k, 0)),
            pl.BlockSpec((Cout, tile_k), lambda g, s, k: (0, k)),
            pl.BlockSpec((Cout, 1), lambda g, s, k: (0, 0)),
        ],
        out_specs=pl.BlockSpec((nb, Cout, tile_s), lambda g, s, k: (g, 0, s)),
        scratch_shapes=[pltpu.VMEM((nb, Cout, tile_s), jnp.float32)],
        compiler_params=pltpu.CompilerParams(
            # "parallel" only pays on v7x megacore; harmless on v5e/v6e.
            dimension_semantics=("parallel", "parallel", "arbitrary"),
            vmem_limit_bytes=int(budget),
        ),
        cost_estimate=pl.CostEstimate(
            flops=flops, transcendentals=0, bytes_accessed=bytes_accessed),
    )(x_rows, w1, b1, w2, b2)

    if S_pad != S:
        out_rows = out_rows[:, :, :S]
    return out_rows.reshape(N, Cout, H, W)


def init_mlp_params(key, in_features, hidden_features=None, out_features=None):
    """Matches Mlp._init_weights: trunc_normal(std = gain*sqrt(2/(fan_in+fan_out)))
    for 1x1 conv weights (fan_in = Cin, fan_out = Cout), bias = 0.
    Weights stored PyTorch-style as (out_ch, in_ch); biases as (C, 1)."""
    hidden_features = hidden_features or in_features
    out_features = out_features or in_features
    network_depth = 10
    gain = (8 * network_depth) ** (-1 / 4)
    k1, k2 = jax.random.split(key)

    def trunc_w(k, fan_out, fan_in):
        std = gain * math.sqrt(2.0 / float(fan_in + fan_out))
        return (jax.random.truncated_normal(k, -2.0, 2.0, (fan_out, fan_in),
                                            dtype=jnp.float32) * std)

    w1 = trunc_w(k1, hidden_features, in_features)      # (Chid, Cin)
    b1 = jnp.zeros((hidden_features, 1), jnp.float32)
    w2 = trunc_w(k2, out_features, hidden_features)     # (Cout, Chid)
    b2 = jnp.zeros((out_features, 1), jnp.float32)
    return w1, b1, w2, b2


def _ref_mlp(x, w1, b1, w2, b2):
    n, ci, h, w = x.shape
    co = w2.shape[0]
    xr = x.reshape(n, ci, h * w)
    hid = jnp.maximum(jnp.einsum('oc,ncs->nos', w1, xr) + b1[None], 0.0)
    y = jnp.einsum('oc,ncs->nos', w2, hid) + b2[None]
    return y.reshape(n, co, h, w)


if __name__ == "__main__":
    key = jax.random.PRNGKey(0)
    kx, kp, kx2, kp2, kx3, kp3 = jax.random.split(key, 6)

    # Case 1: module defaults (out_features = in_features), 128-aligned spatial.
    N, Cin, H, W = 2, 4, 16, 16
    hidden = 32
    x = jax.random.normal(kx, (N, Cin, H, W), dtype=jnp.float32)
    w1, b1, w2, b2 = init_mlp_params(kp, Cin, hidden_features=hidden)
    Cout = w2.shape[0]
    out = jax.block_until_ready(mlp_pallas(x, w1, b1, w2, b2))
    ref = _ref_mlp(x, w1, b1, w2, b2)
    assert out.shape == (N, Cout, H, W)
    assert jnp.allclose(out, ref, atol=1e-5, rtol=1e-5)

    # Case 2: Cout != Cin and non-128-multiple spatial (exercises S padding
    # plus the nb-reduction path that keeps >=2 parallel grid steps).
    N2, Cin2, H2, W2 = 2, 4, 10, 10
    hidden2, outf2 = 32, 8
    x2 = jax.random.normal(kx2, (N2, Cin2, H2, W2), dtype=jnp.float32)
    w1b, b1b, w2b, b2b = init_mlp_params(kp2, Cin2, hidden_features=hidden2,
                                         out_features=outf2)
    out2 = jax.block_until_ready(mlp_pallas(x2, w1b, b1b, w2b, b2b))
    ref2 = _ref_mlp(x2, w1b, b1b, w2b, b2b)
    assert out2.shape == (N2, outf2, H2, W2)
    assert jnp.allclose(out2, ref2, atol=1e-5, rtol=1e-5)

    # Case 3: force hidden-channel tiling (tile_k=128 < Chid=192) to exercise
    # the k-accumulation path and the Chid zero-padding path.
    N3, Cin3, H3, W3 = 2, 4, 16, 16
    hidden3, outf3 = 192, 8
    x3 = jax.random.normal(kx3, (N3, Cin3, H3, W3), dtype=jnp.float32)
    w1c, b1c, w2c, b2c = init_mlp_params(kp3, Cin3, hidden_features=hidden3,
                                         out_features=outf3)
    out3 = jax.block_until_ready(mlp_pallas(x3, w1c, b1c, w2c, b2c, tile_k=128))
    ref3 = _ref_mlp(x3, w1c, b1c, w2c, b2c)
    assert out3.shape == (N3, outf3, H3, W3)
    assert jnp.allclose(out3, ref3, atol=1e-4, rtol=1e-4)

    print("KERNEL_OK")
</pallas_src>

<mosaic_0001>
module attributes {stable_mosaic.version = 11 : i64} {
  func.func @_mlp_kernel(%arg0: i32, %arg1: i32, %arg2: i32, %arg3: memref<2x4x128xf32, #tpu.memory_space<vmem>>, %arg4: memref<32x4xf32, #tpu.memory_space<vmem>>, %arg5: memref<32x1xf32, #tpu.memory_space<vmem>>, %arg6: memref<4x32xf32, #tpu.memory_space<vmem>>, %arg7: memref<4x1xf32, #tpu.memory_space<vmem>>, %arg8: memref<2x4x128xf32, #tpu.memory_space<vmem>>, %arg9: memref<2x4x128xf32, #tpu.memory_space<vmem>>) attributes {dimension_semantics = [#tpu.dimension_semantics<parallel>, #tpu.dimension_semantics<parallel>, #tpu.dimension_semantics<arbitrary>], iteration_bounds = array<i64: 1, 2, 1>, scalar_prefetch = 0 : i64, scratch_operands = 1 : i64, tpu.core_type = #tpu.core_type<tc>, window_params = [{transform_indices = @transform_0, window_bounds = array<i64: 2, 4, 128>}, {transform_indices = @transform_1, window_bounds = array<i64: 32, 4>}, {transform_indices = @transform_2, window_bounds = array<i64: 32, 1>}, {transform_indices = @transform_3, window_bounds = array<i64: 4, 32>}, {pipeline_mode = #tpu.pipeline_mode<synchronous>, transform_indices = @transform_4, window_bounds = array<i64: 4, 1>}, {transform_indices = @transform_5, window_bounds = array<i64: 2, 4, 128>}]} {
    %c0_i32 = arith.constant 0 : i32
    %0 = arith.cmpi eq, %arg2, %c0_i32 : i32
    %1 = arith.extui %0 : i1 to i32
    %c0_i32_0 = arith.constant 0 : i32
    %2 = arith.cmpi ne, %1, %c0_i32_0 : i32
    scf.if %2 {
      %cst_30 = arith.constant 0.000000e+00 : f32
      %37 = vector.broadcast %cst_30 : f32 to vector<2x4x128xf32>
      %c0_31 = arith.constant 0 : index
      %c0_32 = arith.constant 0 : index
      %c0_33 = arith.constant 0 : index
      %38 = vector.load %arg9[%c0_31, %c0_32, %c0_33] : memref<2x4x128xf32, #tpu.memory_space<vmem>>, vector<2x4x128xf32>
      tpu.vector_store %arg9[%c0_31, %c0_32, %c0_33], %37 {strides = array<i32>} : memref<2x4x128xf32, #tpu.memory_space<vmem>>, vector<2x4x128xf32>,
    } else {
    }
    %c0 = arith.constant 0 : index
    %c0_1 = arith.constant 0 : index
    %3 = vector.load %arg4[%c0, %c0_1] : memref<32x4xf32, #tpu.memory_space<vmem>>, vector<32x4xf32>
    %c0_2 = arith.constant 0 : index
    %c0_3 = arith.constant 0 : index
    %4 = vector.load %arg5[%c0_2, %c0_3] : memref<32x1xf32, #tpu.memory_space<vmem>>, vector<32x1xf32>
    %c0_4 = arith.constant 0 : index
    %c0_5 = arith.constant 0 : index
    %5 = vector.load %arg6[%c0_4, %c0_5] : memref<4x32xf32, #tpu.memory_space<vmem>>, vector<4x32xf32>
    %c0_6 = arith.constant 0 : index
    %c0_7 = arith.constant 0 : index
    %c0_8 = arith.constant 0 : index
    %6 = vector.load %arg3[%c0_6, %c0_7, %c0_8] : memref<2x4x128xf32, #tpu.memory_space<vmem>>, vector<1x4x128xf32>
    %7 = vector.shape_cast %6 : vector<1x4x128xf32> to vector<4x128xf32>
    %cst = arith.constant dense<0.000000e+00> : vector<32x128xf32>
    %8 = tpu.matmul %3, %7, %cst {dimension_numbers = #tpu.dot_dimension_numbers<[1], [0], [0], [1], [0, 0, 1, 1], [], []>} : vector<32x4xf32>, vector<4x128xf32>, vector<32x128xf32> -> vector<32x128xf32>
    %9 = vector.broadcast %4 : vector<32x1xf32> to vector<32x128xf32>
    %10 = arith.addf %8, %9 : vector<32x128xf32>
    %cst_9 = arith.constant 0.000000e+00 : f32
    %11 = vector.broadcast %cst_9 : f32 to vector<32x128xf32>
    %12 = arith.maximumf %10, %11 : vector<32x128xf32>
    %c0_10 = arith.constant 0 : index
    %c0_11 = arith.constant 0 : index
    %c0_12 = arith.constant 0 : index
    %13 = vector.load %arg9[%c0_10, %c0_11, %c0_12] : memref<2x4x128xf32, #tpu.memory_space<vmem>>, vector<1x4x128xf32>
    %14 = vector.shape_cast %13 : vector<1x4x128xf32> to vector<4x128xf32>
    %cst_13 = arith.constant dense<0.000000e+00> : vector<4x128xf32>
    %15 = tpu.matmul %5, %12, %cst_13 {dimension_numbers = #tpu.dot_dimension_numbers<[1], [0], [0], [1], [0, 0, 1, 1], [], []>} : vector<4x32xf32>, vector<32x128xf32>, vector<4x128xf32> -> vector<4x128xf32>
    %16 = arith.addf %14, %15 : vector<4x128xf32>
    %c0_14 = arith.constant 0 : index
    %c0_15 = arith.constant 0 : index
    %c0_16 = arith.constant 0 : index
    %17 = vector.load %arg9[%c0_14, %c0_15, %c0_16] : memref<2x4x128xf32, #tpu.memory_space<vmem>>, vector<1x4x128xf32>
    %18 = vector.shape_cast %17 : vector<1x4x128xf32> to vector<4x128xf32>
    %19 = vector.shape_cast %16 : vector<4x128xf32> to vector<1x4x128xf32>
    tpu.vector_store %arg9[%c0_14, %c0_15, %c0_16], %19 {strides = array<i32>} : memref<2x4x128xf32, #tpu.memory_space<vmem>>, vector<1x4x128xf32>,
    %c1 = arith.constant 1 : index
    %c0_17 = arith.constant 0 : index
    %c0_18 = arith.constant 0 : index
    %20 = vector.load %arg3[%c1, %c0_17, %c0_18] : memref<2x4x128xf32, #tpu.memory_space<vmem>>, vector<1x4x128xf32>
    %21 = vector.shape_cast %20 : vector<1x4x128xf32> to vector<4x128xf32>
    %cst_19 = arith.constant dense<0.000000e+00> : vector<32x128xf32>
    %22 = tpu.matmul %3, %21, %cst_19 {dimension_numbers = #tpu.dot_dimension_numbers<[1], [0], [0], [1], [0, 0, 1, 1], [], []>} : vector<32x4xf32>, vector<4x128xf32>, vector<32x128xf32> -> vector<32x128xf32>
    %23 = vector.broadcast %4 : vector<32x1xf32> to vector<32x128xf32>
    %24 = arith.addf %22, %23 : vector<32x128xf32>
    %cst_20 = arith.constant 0.000000e+00 : f32
    %25 = vector.broadcast %cst_20 : f32 to vector<32x128xf32>
    %26 = arith.maximumf %24, %25 : vector<32x128xf32>
    %c1_21 = arith.constant 1 : index
    %c0_22 = arith.constant 0 : index
    %c0_23 = arith.constant 0 : index
    %27 = vector.load %arg9[%c1_21, %c0_22, %c0_23] : memref<2x4x128xf32, #tpu.memory_space<vmem>>, vector<1x4x128xf32>
    %28 = vector.shape_cast %27 : vector<1x4x128xf32> to vector<4x128xf32>
    %cst_24 = arith.constant dense<0.000000e+00> : vector<4x128xf32>
    %29 = tpu.matmul %5, %26, %cst_24 {dimension_numbers = #tpu.dot_dimension_numbers<[1], [0], [0], [1], [0, 0, 1, 1], [], []>} : vector<4x32xf32>, vector<32x128xf32>, vector<4x128xf32> -> vector<4x128xf32>
    %30 = arith.addf %28, %29 : vector<4x128xf32>
    %c1_25 = arith.constant 1 : index
    %c0_26 = arith.constant 0 : index
    %c0_27 = arith.constant 0 : index
    %31 = vector.load %arg9[%c1_25, %c0_26, %c0_27] : memref<2x4x128xf32, #tpu.memory_space<vmem>>, vector<1x4x128xf32>
    %32 = vector.shape_cast %31 : vector<1x4x128xf32> to vector<4x128xf32>
    %33 = vector.shape_cast %30 : vector<4x128xf32> to vector<1x4x128xf32>
    tpu.vector_store %arg9[%c1_25, %c0_26, %c0_27], %33 {strides = array<i32>} : memref<2x4x128xf32, #tpu.memory_space<vmem>>, vector<1x4x128xf32>,
    %c0_i32_28 = arith.constant 0 : i32
    %34 = arith.cmpi eq, %arg2, %c0_i32_28 : i32
    %35 = arith.extui %34 : i1 to i32
    %c0_i32_29 = arith.constant 0 : i32
    %36 = arith.cmpi ne, %35, %c0_i32_29 : i32
    scf.if %36 {
      %c0_30 = arith.constant 0 : index
      %c0_31 = arith.constant 0 : index
      %c0_32 = arith.constant 0 : index
      %37 = vector.load %arg9[%c0_30, %c0_31, %c0_32] : memref<2x4x128xf32, #tpu.memory_space<vmem>>, vector<2x4x128xf32>
      %c0_33 = arith.constant 0 : index
      %c0_34 = arith.constant 0 : index
      %38 = vector.load %arg7[%c0_33, %c0_34] : memref<4x1xf32, #tpu.memory_space<vmem>>, vector<4x1xf32>
      %39 = vector.shape_cast %38 : vector<4x1xf32> to vector<1x4x1xf32>
      %40 = vector.broadcast %39 : vector<1x4x1xf32> to vector<2x4x128xf32>
      %41 = arith.addf %37, %40 : vector<2x4x128xf32>
      %c0_35 = arith.constant 0 : index
      %c0_36 = arith.constant 0 : index
      %c0_37 = arith.constant 0 : index
      %42 = vector.load %arg8[%c0_35, %c0_36, %c0_37] : memref<2x4x128xf32, #tpu.memory_space<vmem>>, vector<2x4x128xf32>
      tpu.vector_store %arg8[%c0_35, %c0_36, %c0_37], %41 {strides = array<i32>} : memref<2x4x128xf32, #tpu.memory_space<vmem>>, vector<2x4x128xf32>,
    } else {
    }
    return
  }
  func.func @transform_0(%arg0: i32, %arg1: i32, %arg2: i32) -> (i32, i32, i32) {
    %c0_i32 = arith.constant 0 : i32
    %c0_i32_0 = arith.constant 0 : i32
    return %arg0, %c0_i32, %arg1 : i32, i32, i32
  }
  func.func @transform_1(%arg0: i32, %arg1: i32, %arg2: i32) -> (i32, i32) {
    %c0_i32 = arith.constant 0 : i32
    %c0_i32_0 = arith.constant 0 : i32
    return %arg2, %c0_i32 : i32, i32
  }
  func.func @transform_2(%arg0: i32, %arg1: i32, %arg2: i32) -> (i32, i32) {
    %c0_i32 = arith.constant 0 : i32
    %c0_i32_0 = arith.constant 0 : i32
    return %arg2, %c0_i32 : i32, i32
  }
  func.func @transform_3(%arg0: i32, %arg1: i32, %arg2: i32) -> (i32, i32) {
    %c0_i32 = arith.constant 0 : i32
    %c0_i32_0 = arith.constant 0 : i32
    return %c0_i32, %arg2 : i32, i32
  }
  func.func @transform_4(%arg0: i32, %arg1: i32, %arg2: i32) -> (i32, i32) {
    %c0_i32 = arith.constant 0 : i32
    %c0_i32_0 = arith.constant 0 : i32
    %c0_i32_1 = arith.constant 0 : i32
    return %c0_i32, %c0_i32_0 : i32, i32
  }
  func.func @transform_5(%arg0: i32, %arg1: i32, %arg2: i32) -> (i32, i32, i32) {
    %c0_i32 = arith.constant 0 : i32
    %c0_i32_0 = arith.constant 0 : i32
    return %arg0, %c0_i32, %arg1 : i32, i32, i32
  }
}

</mosaic_0001>

<llo_original>
// kernel: tpu_custom_call.1
$region0: #{tpu_custom_call.1}
  #allocation0 [shape = 'u32[]', space=smem, size = 0x4, offset = 0x4, fixed_abs, tag = 'smem constant byte address 0x4 - core index']
  #allocation1 [shape = 'u32[72,128]{1,0:T(1,128)}', space=vmem, size = 0x9000, scoped, tag = 'internal scratch']
  #allocation2 [shape = 'f32[2,4,128]{2,1,0:T(4,128)}', space=vmem, size = 0x1000, scoped, tag = 'scratch operand']
  %s0 = inlined_call_operand.vmem [shape: f32[2,4,256], index: 0, kind: input, shape index: {}]
  %s1 = inlined_call_operand.vmem [shape: f32[32,4], index: 1, kind: input, shape index: {}]
  %s2 = inlined_call_operand.vmem [shape: f32[32,1], index: 2, kind: input, shape index: {}]
  %s3 = inlined_call_operand.vmem [shape: f32[4,32], index: 3, kind: input, shape index: {}]
  %s4 = inlined_call_operand.vmem [shape: f32[4,1], index: 4, kind: input, shape index: {}]
  %s5 = inlined_call_operand.hbm [shape: f32[2,4,256], index: 5, kind: output, shape index: {}]
  %s6 = sld [smem:[#allocation0]]
  $region102: #{tpu_custom_call.1} parent=0
    _
  %s8 = ssub.s32 1, %s6
  %s9 = scalar_select 0, %s8, %s6
  $region1: #{tpu_custom_call.1} parent=0
    #allocation3 [shape = 'u8[8192]{0}', space=vmem, size = 0x2000, scoped, tag = 'input window, operand 0']
    #allocation4 [shape = 'u8[8192]{0}', space=vmem, size = 0x2000, scoped, tag = 'output window, operand 0']
    #allocation5 [shape = 's32[2]{0}', space=sflag, size = 0x8, scoped, tag = 'scoped memory for tpu_custom_call.1']
    %10 = vsyncpa [#allocation5], 0
    %s11 = scalar_lea.sflag [#allocation5], 1
    %12 = vsyncpa %s11, 0
    loop: start=0, step=1, limit=4
    $region2: #{tpu_custom_call.1} parent=1 // loop_pre_header
      _
    $region3: #{tpu_custom_call.1} parent=1 // loop_header
      %s14 = sphi 0, %s18
      %p15 = scmp.ge.s32.totalorder %s14, 4
      %s21 = sphi 0, %s40
      %s22 = sphi 0, %s36
      %s23 = sphi 0, %s32
      %s24 = sphi 0, %s21
      %s25 = sphi 0, %s22
      %s26 = sphi 0, %s23
      %s27 = sphi 0, %s24
      %s28 = sphi 0, %s25
      %s29 = sphi 0, %s26
      %s45 = sphi 0, %s47
      %s48 = sphi 0, %s45
      %s49 = sphi 0, %s48
      %s65 = sphi 0, %s49
      %s71 = sphi 0, %s73
      %s74 = sphi 0, %s71
      %s75 = sphi 0, %s74
      %s91 = sphi 0, %s75
      %s97 = sphi 0, %s99
      %s100 = sphi 0, %s97
      %s101 = sphi 0, %s100
      %s117 = sphi 0, %s101
      %s123 = sphi 0, %s125
      %s126 = sphi 0, %s123
      %s127 = sphi 0, %s126
      %s143 = sphi 0, %s127
      %s147 = sphi 0, %s147
      %s149 = sphi 0, %s147
      %s150 = sphi 0, %s149
      %s164 = sphi 0, %s150
      %s172 = sphi 0, %s174
      %s175 = sphi 0, %s172
      %s176 = sphi 0, %s175
      %s192 = sphi 0, %s176
    $region4: #{tpu_custom_call.1} parent=1 // loop_header_branch
      %17 = sbr.rel (%p15) target = $region8
    $region5: #{tpu_custom_call.1} parent=1 // loop_body
      %s19 = ssub.s32 %s14, 1
      %s20 = ssub.s32 %s14, 2
      %s30 = sadd.s32 1, %s23
      %p31 = scmp.ge.s32.totalorder %s30, 1
      %s32 = scalar_select %p31, 0, %s30
      %s33 = sadd.s32 1, %s22
      %s34 = scalar_select %p31, %s33, %s22
      %p35 = scmp.ge.s32.totalorder %s34, 2
      %s36 = scalar_select %p35, 0, %s34
      %s37 = sadd.s32 1, %s21
      %s38 = scalar_select %p35, %s37, %s21
      %p39 = scmp.ge.s32.totalorder %s38, 1
      %s40 = scalar_select %p39, 0, %s38
      %s41 = ssub.s32 %s21, %s40
      %s42 = ssub.s32 %s22, %s36
      %s43 = sor.u32 %s41, %s42
      %p44 = scmp.eq.s32.totalorder %s43, 0
      %s46 = sadd.s32 %s45, 1
      %s47 = scalar_select %p44, %s45, %s46
      %p50 = pneg %p44
      %p51 = scmp.eq.s32.totalorder %s14, 1
      %p52 = por %p50, %p51
      %p53 = scmp.ne.s32.totalorder %s45, %s48
      %p54 = scmp.eq.s32.totalorder %s14, 0
      %p55 = por %p53, %p54
      %p56 = scmp.ne.s32.totalorder %s45, %s48
      %p57 = scmp.eq.s32.totalorder %s19, 1
      %p58 = por %p56, %p57
      %p59 = scmp.ne.s32.totalorder %s48, %s49
      %p60 = scmp.eq.s32.totalorder %s19, 0
      %p61 = por %p59, %p60
      %p62 = scmp.ne.s32.totalorder %s48, %s49
      %p63 = scmp.eq.s32.totalorder %s20, 1
      %p64 = por %p62, %p63
      %p66 = scmp.ne.s32.totalorder %s49, %s65
      %p67 = scmp.eq.s32.totalorder %s20, 0
      %p68 = por %p66, %p67
      %s69 = ssub.s32 %s23, %s32
      %p70 = scmp.eq.s32.totalorder %s69, 0
      %s72 = sadd.s32 %s71, 1
      %s73 = scalar_select %p70, %s71, %s72
      %p76 = pneg %p70
      %p77 = scmp.eq.s32.totalorder %s14, 1
      %p78 = por %p76, %p77
      %p79 = scmp.ne.s32.totalorder %s71, %s74
      %p80 = scmp.eq.s32.totalorder %s14, 0
      %p81 = por %p79, %p80
      %p82 = scmp.ne.s32.totalorder %s71, %s74
      %p83 = scmp.eq.s32.totalorder %s19, 1
      %p84 = por %p82, %p83
      %p85 = scmp.ne.s32.totalorder %s74, %s75
      %p86 = scmp.eq.s32.totalorder %s19, 0
      %p87 = por %p85, %p86
      %p88 = scmp.ne.s32.totalorder %s74, %s75
      %p89 = scmp.eq.s32.totalorder %s20, 1
      %p90 = por %p88, %p89
      %p92 = scmp.ne.s32.totalorder %s75, %s91
      %p93 = scmp.eq.s32.totalorder %s20, 0
      %p94 = por %p92, %p93
      %s95 = ssub.s32 %s23, %s32
      %p96 = scmp.eq.s32.totalorder %s95, 0
      %s98 = sadd.s32 %s97, 1
      %s99 = scalar_select %p96, %s97, %s98
      %p102 = pneg %p96
      %p103 = scmp.eq.s32.totalorder %s14, 1
      %p104 = por %p102, %p103
      %p105 = scmp.ne.s32.totalorder %s97, %s100
      %p106 = scmp.eq.s32.totalorder %s14, 0
      %p107 = por %p105, %p106
      %p108 = scmp.ne.s32.totalorder %s97, %s100
      %p109 = scmp.eq.s32.totalorder %s19, 1
      %p110 = por %p108, %p109
      %p111 = scmp.ne.s32.totalorder %s100, %s101
      %p112 = scmp.eq.s32.totalorder %s19, 0
      %p113 = por %p111, %p112
      %p114 = scmp.ne.s32.totalorder %s100, %s101
      %p115 = scmp.eq.s32.totalorder %s20, 1
      %p116 = por %p114, %p115
      %p118 = scmp.ne.s32.totalorder %s101, %s117
      %p119 = scmp.eq.s32.totalorder %s20, 0
      %p120 = por %p118, %p119
      %s121 = ssub.s32 %s23, %s32
      %p122 = scmp.eq.s32.totalorder %s121, 0
      %s124 = sadd.s32 %s123, 1
      %s125 = scalar_select %p122, %s123, %s124
      %p128 = pneg %p122
      %p129 = scmp.eq.s32.totalorder %s14, 1
      %p130 = por %p128, %p129
      %p131 = scmp.ne.s32.totalorder %s123, %s126
      %p132 = scmp.eq.s32.totalorder %s14, 0
      %p133 = por %p131, %p132
      %p134 = scmp.ne.s32.totalorder %s123, %s126
      %p135 = scmp.eq.s32.totalorder %s19, 1
      %p136 = por %p134, %p135
      %p137 = scmp.ne.s32.totalorder %s126, %s127
      %p138 = scmp.eq.s32.totalorder %s19, 0
      %p139 = por %p137, %p138
      %p140 = scmp.ne.s32.totalorder %s126, %s127
      %p141 = scmp.eq.s32.totalorder %s20, 1
      %p142 = por %p140, %p141
      %p144 = scmp.ne.s32.totalorder %s127, %s143
      %p145 = scmp.eq.s32.totalorder %s20, 0
      %p146 = por %p144, %p145
      %s148 = sadd.s32 %s147, 1
      %p151 = scmp.eq.s32.totalorder %s14, 1
      %p152 = scmp.ne.s32.totalorder %s147, %s149
      %p153 = scmp.eq.s32.totalorder %s14, 0
      %p154 = por %p152, %p153
      %p155 = scmp.ne.s32.totalorder %s147, %s149
      %p156 = scmp.eq.s32.totalorder %s19, 1
      %p157 = por %p155, %p156
      %p158 = scmp.ne.s32.totalorder %s149, %s150
      %p159 = scmp.eq.s32.totalorder %s19, 0
      %p160 = por %p158, %p159
      %p161 = scmp.ne.s32.totalorder %s149, %s150
      %p162 = scmp.eq.s32.totalorder %s20, 1
      %p163 = por %p161, %p162
      %p165 = scmp.ne.s32.totalorder %s150, %s164
      %p166 = scmp.eq.s32.totalorder %s20, 0
      %p167 = por %p165, %p166
      %s168 = ssub.s32 %s21, %s40
      %s169 = ssub.s32 %s22, %s36
      %s170 = sor.u32 %s168, %s169
      %p171 = scmp.eq.s32.totalorder %s170, 0
      %s173 = sadd.s32 %s172, 1
      %s174 = scalar_select %p171, %s172, %s173
      %p177 = pneg %p171
      %p178 = scmp.eq.s32.totalorder %s14, 1
      %p179 = por %p177, %p178
      %p180 = scmp.ne.s32.totalorder %s172, %s175
      %p181 = scmp.eq.s32.totalorder %s14, 0
      %p182 = por %p180, %p181
      %p183 = scmp.ne.s32.totalorder %s172, %s175
      %p184 = scmp.eq.s32.totalorder %s19, 1
      %p185 = por %p183, %p184
      %p186 = scmp.ne.s32.totalorder %s175, %s176
      %p187 = scmp.eq.s32.totalorder %s19, 0
      %p188 = por %p186, %p187
      %p189 = scmp.ne.s32.totalorder %s175, %s176
      %p190 = scmp.eq.s32.totalorder %s20, 1
      %p191 = por %p189, %p190
      %p193 = scmp.ne.s32.totalorder %s176, %s192
      %p194 = scmp.eq.s32.totalorder %s20, 0
      %p195 = por %p193, %p194
      %p196 = scmp.le.s32.totalorder 1, %s14
      %p197 = scmp.lt.s32.totalorder %s14, 3
      %p198 = pnand %p196, %p197
      %p199 = pneg %p198
      // Predicated region
      $region9: #{tpu_custom_call.1} parent=5 // pred_check
        _
      $region10: #{tpu_custom_call.1} parent=5 // pred_check_branch
        %201 = sbr.rel (%p198) target = $region12
      $region11: #{tpu_custom_call.1} parent=5 // pred_region
        %s202 = ssub.s32 %s14, 1
        // Predicated region
        $region13: #{tpu_custom_call.1} parent=11 // pred_check
          %p203 = pneg %p87
        $region14: #{tpu_custom_call.1} parent=11 // pred_check_branch
          %205 = sbr.rel (%p203) target = $region16
        $region15: #{tpu_custom_call.1} parent=11 // pred_region
          %s206 = smul.u32 4, %s26
          %p207 = scmp.lt.s32.totalorder %s206, 3
          %s208 = scalar_select %p207, %s206, 3
          %s209 = smul.addr %s208, 8
          %s210 = scalar_lea.vmem %s1, %s209
          %s211 = smul.u32 4, %s26
        $region16: #{tpu_custom_call.1} parent=11 // pred_fallthru
          _
        // Predicated region
        $region17: #{tpu_custom_call.1} parent=11 // pred_check
          %p212 = pneg %p113
        $region18: #{tpu_custom_call.1} parent=11 // pred_check_branch
          %214 = sbr.rel (%p212) target = $region20
        $region19: #{tpu_custom_call.1} parent=11 // pred_region
          %s215 = smul.u32 4, %s26
          %p216 = scmp.lt.s32.totalorder %s215, 3
          %s217 = scalar_select %p216, %s215, 3
          %s218 = smul.addr %s217, 8
          %s219 = scalar_lea.vmem %s2, %s218
          %s220 = smul.u32 4, %s26
        $region20: #{tpu_custom_call.1} parent=11 // pred_fallthru
          _
        // Predicated region
        $region21: #{tpu_custom_call.1} parent=11 // pred_check
          %p221 = pneg %p139
        $region22: #{tpu_custom_call.1} parent=11 // pred_check_branch
          %223 = sbr.rel (%p221) target = $region24
        $region23: #{tpu_custom_call.1} parent=11 // pred_region
          %p224 = scmp.lt.s32.totalorder %s26, 0
          %s225 = scalar_select %p224, %s26, 0
          %s226 = smul.addr %s225, 4
          %s227 = scalar_lea.vmem %s3, %s226
        $region24: #{tpu_custom_call.1} parent=11 // pred_fallthru
          _
        // Predicated region
        $region25: #{tpu_custom_call.1} parent=11 // pred_check
          %p228 = pneg %p160
        $region26: #{tpu_custom_call.1} parent=11 // pred_check_branch
          %230 = sbr.rel (%p228) target = $region28
        $region27: #{tpu_custom_call.1} parent=11 // pred_region
          _
        $region28: #{tpu_custom_call.1} parent=11 // pred_fallthru
          _
      $region12: #{tpu_custom_call.1} parent=5 // pred_fallthru
        _
      %p231 = scmp.lt.s32.totalorder %s14, 2
      // Predicated region
      $region29: #{tpu_custom_call.1} parent=5 // pred_check
        %p232 = pneg %p231
      $region30: #{tpu_custom_call.1} parent=5 // pred_check_branch
        %234 = sbr.rel (%p232) target = $region32
      $region31: #{tpu_custom_call.1} parent=5 // pred_region
        // Predicated region
        $region33: #{tpu_custom_call.1} parent=31 // pred_check
          %p235 = pneg %p55
        $region34: #{tpu_custom_call.1} parent=31 // pred_check_branch
          %237 = sbr.rel (%p235) target = $region36
        $region35: #{tpu_custom_call.1} parent=31 // pred_region
          %s238 = sand.u32 %s45, 1
          %s239 = sand.u32 %s45, 1
          %s240 = smul.addr %s239, 8
          %s241 = scalar_lea.vmem [#allocation3], %s240
          %s242 = smul.u32 2, %s21
          %s243 = smul.addr %s242, 2
          %s244 = sadd.s32 %s22, %s243
          %s245 = smul.addr %s244, 4
          %s246 = scalar_lea.vmem %s0, %s245
          // Predicated region
          $region37: #{tpu_custom_call.1} parent=35 // pred_check
            _
          $region38: #{tpu_custom_call.1} parent=35 // pred_check_branch
            %248 = sbr.rel (0) target = $region40
          $region39: #{tpu_custom_call.1} parent=35 // pred_region
            // Predicated region
            $region41: #{tpu_custom_call.1} parent=39 // pred_check
              _
            $region42: #{tpu_custom_call.1} parent=39 // pred_check_branch
              %250 = sbr.rel target = $region44
            $region43: #{tpu_custom_call.1} parent=39 // pred_region
              // Predicated region
              $region56: #{tpu_custom_call.1} parent=43 // pred_check
                _
              $region57: #{tpu_custom_call.1} parent=43 // pred_check_branch
                %268 = sbr.rel (0) target = $region59
              $region58: #{tpu_custom_call.1} parent=43 // pred_region
                loop: start=0, step=1, limit=1
                $region60: #{tpu_custom_call.1} parent=58 // loop_pre_header
                  _
                $region61: #{tpu_custom_call.1} parent=58 // loop_header
                  %s270 = sphi 0, %s274
                  %p271 = scmp.ge.s32.totalorder %s270, 1
                  %s275 = sphi %s246, %s246
                  %s276 = sphi %s241, %s241
                $region62: #{tpu_custom_call.1} parent=58 // loop_header_branch
                  %273 = sbr.rel (%p271) target = $region66
                $region63: #{tpu_custom_call.1} parent=58 // loop_body
                  _
                $region64: #{tpu_custom_call.1} parent=58 // loop_footer
                  %s274 = sadd.s32 1, %s270
                $region65: #{tpu_custom_call.1} parent=58 // loop_footer_branch
                  %269 = sbr.rel target = $region61
                $region66: #{tpu_custom_call.1} parent=58 // loop_exit
                  _
                %s278 = ssub.s32 16, 1
                loop: start=0, step=1, limit=1
                $region67: #{tpu_custom_call.1} parent=58 // loop_pre_header
                  _
                $region68: #{tpu_custom_call.1} parent=58 // loop_header
                  %s280 = sphi 0, %s284
                  %p281 = scmp.ge.s32.totalorder %s280, 1
                  %s285 = sphi %s246, %s246
                  %s286 = sphi %s241, %s241
                $region69: #{tpu_custom_call.1} parent=58 // loop_header_branch
                  %283 = sbr.rel (%p281) target = $region73
                $region70: #{tpu_custom_call.1} parent=58 // loop_body
                  %v287 = vld [vmem:[%s285] sm:%s278]
                  %288 = vst [vmem:[%s286] sm:%s278] %v287
                  %v289 = vld [vmem:[%s285 + $0x8] sm:%s278]
                  %290 = vst [vmem:[%s286 + $0x4] sm:%s278] %v289
                $region71: #{tpu_custom_call.1} parent=58 // loop_footer
                  %s284 = sadd.s32 1, %s280
                $region72: #{tpu_custom_call.1} parent=58 // loop_footer_branch
                  %279 = sbr.rel target = $region68
                $region73: #{tpu_custom_call.1} parent=58 // loop_exit
                  _
              $region59: #{tpu_custom_call.1} parent=43 // pred_fallthru
                _
            $region44: #{tpu_custom_call.1} parent=39 // pred_fallthru
              _
            // Predicated region
            $region45: #{tpu_custom_call.1} parent=39 // pred_check
              _
            $region46: #{tpu_custom_call.1} parent=39 // pred_check_branch
              %252 = sbr.rel (0) target = $region48
            $region47: #{tpu_custom_call.1} parent=39 // pred_region
              %s254 = ssub.s32 16, 1
              loop: start=0, step=1, limit=1
              $region49: #{tpu_custom_call.1} parent=47 // loop_pre_header
                _
              $region50: #{tpu_custom_call.1} parent=47 // loop_header
                %s256 = sphi 0, %s260
                %p257 = scmp.ge.s32.totalorder %s256, 1
                %s261 = sphi %s246, %s246
                %s262 = sphi %s241, %s241
              $region51: #{tpu_custom_call.1} parent=47 // loop_header_branch
                %259 = sbr.rel (%p257) target = $region55
              $region52: #{tpu_custom_call.1} parent=47 // loop_body
                %v263 = vld [vmem:[%s261] sm:%s254]
                %264 = vst [vmem:[%s262] sm:%s254] %v263
                %v265 = vld [vmem:[%s261 + $0x8] sm:%s254]
                %266 = vst [vmem:[%s262 + $0x4] sm:%s254] %v265
              $region53: #{tpu_custom_call.1} parent=47 // loop_footer
                %s260 = sadd.s32 1, %s256
              $region54: #{tpu_custom_call.1} parent=47 // loop_footer_branch
                %255 = sbr.rel target = $region50
              $region55: #{tpu_custom_call.1} parent=47 // loop_exit
                _
            $region48: #{tpu_custom_call.1} parent=39 // pred_fallthru
              _
          $region40: #{tpu_custom_call.1} parent=35 // pred_fallthru
            _
          %291 = vnop
        $region36: #{tpu_custom_call.1} parent=31 // pred_fallthru
          _
      $region32: #{tpu_custom_call.1} parent=5 // pred_fallthru
        _
      %p292 = scmp.le.s32.totalorder 1, %s14
      %p293 = scmp.lt.s32.totalorder %s14, 3
      %p294 = pnand %p292, %p293
      %p295 = pneg %p294
      // Predicated region
      $region74: #{tpu_custom_call.1} parent=5 // pred_check
        _
      $region75: #{tpu_custom_call.1} parent=5 // pred_check_branch
        %297 = sbr.rel (%p294) target = $region77
      $region76: #{tpu_custom_call.1} parent=5 // pred_region
        %s298 = ssub.s32 %s14, 1
        %s299 = sand.u32 %s48, 1
        %s300 = sand.u32 %s48, 1
        %s301 = smul.addr %s300, 8
        %s302 = scalar_lea.vmem [#allocation3], %s301
        // Predicated region
        $region78: #{tpu_custom_call.1} parent=76 // pred_check
          %p303 = pneg %p61
        $region79: #{tpu_custom_call.1} parent=76 // pred_check_branch
          %305 = sbr.rel (%p303) target = $region81
        $region80: #{tpu_custom_call.1} parent=76 // pred_region
          _
        $region81: #{tpu_custom_call.1} parent=76 // pred_fallthru
          _
        %s306 = sand.u32 %s48, 1
        %s307 = sand.u32 %s48, 1
        %s308 = smul.addr %s307, 8
        %s309 = scalar_lea.vmem [#allocation3], %s308
        %p310 = pneg %p61
        %p311 = pneg %p58
        %s312 = smul.u32 4, %s26
        %p313 = scmp.lt.s32.totalorder %s312, 3
        %s314 = scalar_select %p313, %s312, 3
        %s315 = smul.addr %s314, 8
        %s316 = scalar_lea.vmem %s1, %s315
        %p317 = pneg %p87
        %p318 = pneg %p84
        %s319 = smul.u32 4, %s26
        %p320 = scmp.lt.s32.totalorder %s319, 3
        %s321 = scalar_select %p320, %s319, 3
        %s322 = smul.addr %s321, 8
        %s323 = scalar_lea.vmem %s2, %s322
        %p324 = pneg %p113
        %p325 = pneg %p110
        %p326 = scmp.lt.s32.totalorder %s26, 0
        %s327 = scalar_select %p326, %s26, 0
        %s328 = smul.addr %s327, 4
        %s329 = scalar_lea.vmem %s3, %s328
        %p330 = pneg %p139
        %p331 = pneg %p136
        %p332 = pneg %p160
        %p333 = pneg %p157
        %p334 = pneg %p188
        %p335 = pneg %p185
        %s336 = sand.u32 %s175, 1
        %s337 = scalar_lea.sflag [#allocation5], %s336
        %s338 = sand.u32 %s175, 1
        %s339 = smul.addr %s338, 8
        %s340 = scalar_lea.vmem [#allocation4], %s339
        %s341 = smul.u32 2, %s24
        %s342 = smul.u32 4, %s26
        %p343 = scmp.lt.s32.totalorder %s342, 3
        %s344 = scalar_select %p343, %s342, 3
        %s345 = smul.addr %s344, 8
        %s346 = scalar_lea.vmem %s1, %s345
        %s347 = smul.u32 4, %s26
        %s348 = smul.u32 4, %s26
        %p349 = scmp.lt.s32.totalorder %s348, 3
        %s350 = scalar_select %p349, %s348, 3
        %s351 = smul.addr %s350, 8
        %s352 = scalar_lea.vmem %s2, %s351
        %s353 = smul.u32 4, %s26
        %p354 = scmp.lt.s32.totalorder %s26, 0
        %s355 = scalar_select %p354, %s26, 0
        %s356 = smul.addr %s355, 4
        %s357 = scalar_lea.vmem %s3, %s356
        %s358 = smul.u32 2, %s24
        %p359 = scmp.eq.s32.totalorder %s26, 0
        // Predicated region
        $region82: #{tpu_custom_call.1} parent=76 // pred_check
          %p360 = pneg %p359
        $region83: #{tpu_custom_call.1} parent=76 // pred_check_branch
          %362 = sbr.rel (%p360) target = $region85
        $region84: #{tpu_custom_call.1} parent=76 // pred_region
          %363 = vst [vmem:[#allocation2] sm:$0xf] 0.0
          %364 = vst [vmem:[#allocation2 + $0x4] sm:$0xf] 0.0
        $region85: #{tpu_custom_call.1} parent=76 // pred_fallthru
          _
        %v365 = vld [vmem:[%s346] sm:$0xff]
        %v366 = vld [vmem:[%s346 + $0x8] sm:$0xff]
        %v367 = vld [vmem:[%s346 + $0x10] sm:$0xff]
        %v368 = vld [vmem:[%s346 + $0x18] sm:$0xff]
        %v369 = vld [vmem:[%s352] sm:$0xff]
        %v370 = vld [vmem:[%s352 + $0x8] sm:$0xff]
        %v371 = vld [vmem:[%s352 + $0x10] sm:$0xff]
        %v372 = vld [vmem:[%s352 + $0x18] sm:$0xff]
        %v373 = vld [vmem:[%s357] sm:$0xf]
        %v374 = vld [vmem:[%s302] sm:$0xf]
        %376 = vset.pattern.permute.xlu0 0
        %377 = vperm.xlu0 %376, %v369
        %v378 = vpop.permute.xlu0 %377
        %381 = vset.pattern.permute.xlu0 0
        %382 = vperm.xlu0 %381, %v370
        %v383 = vpop.permute.xlu0 %382
        %386 = vset.pattern.permute.xlu0 0
        %387 = vperm.xlu0 %386, %v371
        %v388 = vpop.permute.xlu0 %387
        %391 = vset.pattern.permute.xlu0 0
        %392 = vperm.xlu0 %391, %v372
        %v393 = vpop.permute.xlu0 %392
        %vm395 = vcmask 31744
        %v397 = vsel %vm395, %v365, 0
        %v400 = vsel %vm395, %v366, 0
        %v403 = vsel %vm395, %v367, 0
        %v406 = vsel %vm395, %v368, 0
        %vm408 = vcmask 1043456
        %v410 = vsel %vm408, %v374, 0
        %412 = vmatpush.msra.mxu0 0.0
        %413 = vmatpush.msra.mxu0 0.0
        %414 = vmatpush.msra.mxu0 0.0
        %415 = vmatpush.msra.mxu0 0.0
        %416 = vmatpush.msra.mxu0 0.0
        %417 = vmatpush.msra.mxu0 0.0
        %418 = vmatpush.msra.mxu0 0.0
        %419 = vmatpush.msra.mxu0 0.0
        %420 = vmatpush.msra.mxu0 0.0
        %421 = vmatpush.msra.mxu0 0.0
        %422 = vmatpush.msra.mxu0 0.0
        %423 = vmatpush.msra.mxu0 0.0
        %424 = vmatpush.msra.mxu0 0.0
        %425 = vmatpush.msra.mxu0 0.0
        %426 = vmatpush.msra.mxu0 0.0
        %427 = vmatpush.msra.mxu0 %v410
        %428 = vmatmul.f32.gmra.mxu0 %v397
        %v429 = vpop.f32.mrf.mxu0
        %v430 = vadd.f32 %v378, %v429
        %431 = vmatmul.f32.gmra.mxu0 %v400
        %v432 = vpop.f32.mrf.mxu0
        %v433 = vadd.f32 %v383, %v432
        %434 = vmatmul.f32.gmra.mxu0 %v403
        %v435 = vpop.f32.mrf.mxu0
        %v436 = vadd.f32 %v388, %v435
        %437 = vmatmul.f32.gmra.mxu0 %v406
        %v438 = vpop.f32.mrf.mxu0
        %v439 = vadd.f32 %v393, %v438
        %440 = vdwg.mxu0
        %v441 = vmax.f32 %v430, 0.0
        %v442 = vmax.f32 %v433, 0.0
        %v443 = vmax.f32 %v436, 0.0
        %v444 = vmax.f32 %v439, 0.0
        %v445 = vld [vmem:[#allocation2] sm:$0xf]
        %vm446 = vcmask 261120
        %v448 = vsel %vm446, %v373, 0
        %450 = vmatpush.msra.mxu0 0.0
        %451 = vmatpush.msra.mxu0 0.0
        %452 = vmatpush.msra.mxu0 0.0
        %453 = vmatpush.msra.mxu0 0.0
        %454 = vmatpush.msra.mxu0 0.0
        %455 = vmatpush.msra.mxu0 0.0
        %456 = vmatpush.msra.mxu0 0.0
        %457 = vmatpush.msra.mxu0 0.0
        %458 = vmatpush.msra.mxu0 0.0
        %459 = vmatpush.msra.mxu0 0.0
        %460 = vmatpush.msra.mxu0 0.0
        %461 = vmatpush.msra.mxu0 0.0
        %462 = vmatpush.msra.mxu0 %v444
        %463 = vmatpush.msra.mxu0 %v443
        %464 = vmatpush.msra.mxu0 %v442
        %465 = vmatpush.msra.mxu0 %v441
        %466 = vmatmul.f32.gmra.mxu0 %v448
        %v467 = vpop.f32.mrf.mxu0
        %v468 = vadd.f32 0.0, %v467
        %469 = vdwg.mxu0
        %v470 = vadd.f32 %v445, %v468
        %471 = vst [vmem:[#allocation2] sm:$0xf] %v470
        %s472 = scalar_lea.vmem %s302, 4 [#allocation3]
        %v473 = vld [vmem:[%s472] sm:$0xf]
        %v475 = vsel %vm408, %v473, 0
        %477 = vmatpush.msra.mxu0 0.0
        %478 = vmatpush.msra.mxu0 0.0
        %479 = vmatpush.msra.mxu0 0.0
        %480 = vmatpush.msra.mxu0 0.0
        %481 = vmatpush.msra.mxu0 0.0
        %482 = vmatpush.msra.mxu0 0.0
        %483 = vmatpush.msra.mxu0 0.0
        %484 = vmatpush.msra.mxu0 0.0
        %485 = vmatpush.msra.mxu0 0.0
        %486 = vmatpush.msra.mxu0 0.0
        %487 = vmatpush.msra.mxu0 0.0
        %488 = vmatpush.msra.mxu0 0.0
        %489 = vmatpush.msra.mxu0 0.0
        %490 = vmatpush.msra.mxu0 0.0
        %491 = vmatpush.msra.mxu0 0.0
        %492 = vmatpush.msra.mxu0 %v475
        %493 = vmatmul.f32.gmra.mxu0 %v397
        %v494 = vpop.f32.mrf.mxu0
        %v495 = vadd.f32 %v378, %v494
        %496 = vmatmul.f32.gmra.mxu0 %v400
        %v497 = vpop.f32.mrf.mxu0
        %v498 = vadd.f32 %v383, %v497
        %499 = vmatmul.f32.gmra.mxu0 %v403
        %v500 = vpop.f32.mrf.mxu0
        %v501 = vadd.f32 %v388, %v500
        %502 = vmatmul.f32.gmra.mxu0 %v406
        %v503 = vpop.f32.mrf.mxu0
        %v504 = vadd.f32 %v393, %v503
        %505 = vdwg.mxu0
        %v506 = vmax.f32 %v495, 0.0
        %v507 = vmax.f32 %v498, 0.0
        %v508 = vmax.f32 %v501, 0.0
        %v509 = vmax.f32 %v504, 0.0
        %s510 = scalar_lea.vmem [#allocation2], 4
        %v511 = vld [vmem:[%s510] sm:$0xf]
        %512 = vmatpush.msra.mxu0 0.0
        %513 = vmatpush.msra.mxu0 0.0
        %514 = vmatpush.msra.mxu0 0.0
        %515 = vmatpush.msra.mxu0 0.0
        %516 = vmatpush.msra.mxu0 0.0
        %517 = vmatpush.msra.mxu0 0.0
        %518 = vmatpush.msra.mxu0 0.0
        %519 = vmatpush.msra.mxu0 0.0
        %520 = vmatpush.msra.mxu0 0.0
        %521 = vmatpush.msra.mxu0 0.0
        %522 = vmatpush.msra.mxu0 0.0
        %523 = vmatpush.msra.mxu0 0.0
        %524 = vmatpush.msra.mxu0 %v509
        %525 = vmatpush.msra.mxu0 %v508
        %526 = vmatpush.msra.mxu0 %v507
        %527 = vmatpush.msra.mxu0 %v506
        %528 = vmatmul.f32.gmra.mxu0 %v448
        %v529 = vpop.f32.mrf.mxu0
        %v530 = vadd.f32 0.0, %v529
        %531 = vdwg.mxu0
        %v532 = vadd.f32 %v511, %v530
        %533 = vst [vmem:[%s510] sm:$0xf] %v532
        // Predicated region
        $region86: #{tpu_custom_call.1} parent=76 // pred_check
          %p534 = pneg %p359
        $region87: #{tpu_custom_call.1} parent=76 // pred_check_branch
          %536 = sbr.rel (%p534) target = $region89
        $region88: #{tpu_custom_call.1} parent=76 // pred_region
          %v537 = vld [vmem:[#allocation2] sm:$0xf]
          %v538 = vld [vmem:[#allocation2 + $0x4] sm:$0xf]
          %v539 = vld [vmem:[%s4] sm:$0xf]
          %541 = vset.pattern.permute.xlu0 0
          %542 = vperm.xlu0 %541, %v539
          %v543 = vpop.permute.xlu0 %542
          %v545 = vadd.f32 %v537, %v543
          %v546 = vadd.f32 %v538, %v543
          %547 = vst [vmem:[%s340] sm:$0xf] %v545
          %548 = vst [vmem:[%s340 + $0x4] sm:$0xf] %v546
        $region89: #{tpu_custom_call.1} parent=76 // pred_fallthru
          _
        %s549 = sand.u32 %s175, 1
        %s550 = scalar_lea.sflag [#allocation5], %s549
        %s551 = sand.u32 %s175, 1
        %s552 = smul.addr %s551, 8
        %s553 = scalar_lea.vmem [#allocation4], %s552
        // Predicated region
        $region90: #{tpu_custom_call.1} parent=76 // pred_check
          %p554 = pneg %p185
        $region91: #{tpu_custom_call.1} parent=76 // pred_check_branch
          %556 = sbr.rel (%p554) target = $region93
        $region92: #{tpu_custom_call.1} parent=76 // pred_region
          %s557 = smul.u32 2, %s24
          %559 = vsyncadd %s550, 0
          %s560 = smul.addr %s557, 2
          %s561 = sadd.s32 %s25, %s560
          %s562 = smul.addr %s561, 4
          %s563 = scalar_lea.hbm %s5, %s562
          %s564 = sshll.u32 %s553, 4
          %s565 = int_to_ptr.vmem [resolvable:$true] %s564
          %s566 = sshll.u32 %s563, 4
          %s567 = int_to_ptr.hbm [resolvable:$true] %s566
          %572 = dma.vmem_to_hbm [thread:$0]  %s565, 128, %s567, %s550, 64, 128, 4
        $region93: #{tpu_custom_call.1} parent=76 // pred_fallthru
          _
      $region77: #{tpu_custom_call.1} parent=5 // pred_fallthru
        _
      %p573 = scmp.le.s32.totalorder 2, %s14
      // Predicated region
      $region94: #{tpu_custom_call.1} parent=5 // pred_check
        %p574 = pneg %p573
      $region95: #{tpu_custom_call.1} parent=5 // pred_check_branch
        %576 = sbr.rel (%p574) target = $region97
      $region96: #{tpu_custom_call.1} parent=5 // pred_region
        %s577 = ssub.s32 %s14, 2
        // Predicated region
        $region98: #{tpu_custom_call.1} parent=96 // pred_check
          %p578 = pneg %p191
        $region99: #{tpu_custom_call.1} parent=96 // pred_check_branch
          %580 = sbr.rel (%p578) target = $region101
        $region100: #{tpu_custom_call.1} parent=96 // pred_region
          %s581 = sand.u32 %s176, 1
          %s582 = scalar_lea.sflag [#allocation5], %s581
          %s583 = sand.u32 %s176, 1
          %s584 = smul.addr %s583, 8
          %s585 = scalar_lea.vmem [#allocation4], %s584
          %587 = dma.done %s582, 128
        $region101: #{tpu_custom_call.1} parent=96 // pred_fallthru
          _
      $region97: #{tpu_custom_call.1} parent=5 // pred_fallthru
        _
    $region6: #{tpu_custom_call.1} parent=1 // loop_footer
      %s18 = sadd.s32 1, %s14
    $region7: #{tpu_custom_call.1} parent=1 // loop_footer_branch
      %13 = sbr.rel target = $region3
    $region8: #{tpu_custom_call.1} parent=1 // loop_exit
      _
    %588 = vsyncpa [#allocation5], 1
    %s589 = scalar_lea.sflag [#allocation5], 1
    %590 = vsyncpa %s589, 1

</llo_original>
